<compile_context>
chip_gen: v6e
topology: v6e:2x2x1
jax: 0.10.0
libtpu: 0.0.40
codegen_flags: <defaults>
</compile_context>

<pallas_src>
import jax
import jax.numpy as jnp
from jax.experimental import pallas as pl
from jax.experimental.pallas import tpu as pltpu

LEAKY_SLOPE = 0.01  # torch.nn.LeakyReLU default negative_slope


def _make_mlp_exp_kernel(num_layers):
    """Kernel: exp(W_n(... leaky(W_1 @ x_t + b_1) ...) + b_n), feature-major."""

    def kernel(*refs):
        # refs = (xT_ref, w1, b1, ..., w_n, b_n, out_ref)
        #   xT_ref : (input_dim, TILE_B)          batch on lanes
        #   w_i    : (out_i, in_i)                torch layout, VMEM-resident
        #   b_i    : (out_i, 1)
        #   out    : (out_dim, TILE_B)            lane-dense store
        xT_ref = refs[0]
        out_ref = refs[-1]

        h = xT_ref[...]  # (input_dim, TILE_B), f32
        for i in range(num_layers):
            w = refs[1 + 2 * i][...]  # (out_i, in_i)
            b = refs[2 + 2 * i][...]  # (out_i, 1)
            # (out_i, in_i) @ (in_i, TILE_B) -> (out_i, TILE_B): natural MXU feed,
            # no transpose/relayout anywhere in the loop.
            h = jnp.dot(w, h, preferred_element_type=jnp.float32) + b
            if i < num_layers - 1:
                h = jnp.where(h > 0, h, LEAKY_SLOPE * h)  # LeakyReLU
        out_ref[...] = jnp.exp(h).astype(out_ref.dtype)

    return kernel


def exponential_model_forward(x, weights, biases, *, tile_b=8192):
    """x: (B, input_dim) f32. weights[i]: (out_i, in_i) torch layout. biases[i]: (out_i,)."""
    assert len(weights) == len(biases)
    num_layers = len(weights)
    batch, input_dim = x.shape
    out_dim = weights[-1].shape[0]

    # Feature-major input: batch maps to the lane axis for the whole pipeline.
    # (For (B, 16) this is one cheap XLA pass; in production the caller can
    #  provide x already feature-major and skip it.)
    x_t = x.T  # (input_dim, B)

    # --- batch tile: multiple of 128 when gridded, or the full batch for a
    #     single block (full-extent blocks are exempt from the 128 rule) ---
    if batch >= tile_b:
        tb = max(128, (tile_b // 128) * 128)
    else:
        tb = batch
    grid_n = pl.cdiv(batch, tb)  # ragged last block handled by Pallas, no host pad

    # --- args & specs: x tiled over batch lanes, params resident in VMEM ---
    args = [x_t]
    in_specs = [pl.BlockSpec((input_dim, tb), lambda i: (0, i))]
    for w, b in zip(weights, biases):
        w = jnp.asarray(w, jnp.float32)            # (out_i, in_i) — torch layout as-is
        b2 = jnp.asarray(b, jnp.float32).reshape(-1, 1)  # (out_i, 1)
        args += [w, b2]
        in_specs += [
            pl.BlockSpec(w.shape, lambda i: (0, 0)),
            pl.BlockSpec(b2.shape, lambda i: (0, 0)),
        ]

    # Lane-dense output: (out_dim, B), tiled along batch lanes.
    out_shape = jax.ShapeDtypeStruct((out_dim, batch), jnp.float32)
    out_spec = pl.BlockSpec((out_dim, tb), lambda i: (0, i))

    kernel = _make_mlp_exp_kernel(num_layers)
    out_t = pl.pallas_call(
        kernel,
        grid=(grid_n,),
        in_specs=in_specs,
        out_specs=out_spec,
        out_shape=out_shape,
        compiler_params=pltpu.CompilerParams(
            dimension_semantics=("parallel",),   # batch tiles independent (v7x megacore)
            vmem_limit_bytes=32 * 1024 * 1024,   # lane-dense tiles are tiny; safe on all gens
        ),
    )(*args)

    # (out_dim, B) -> (B, out_dim); for out_dim==1 this is effectively a reshape.
    return out_t.T


def init_params(key, layers):
    """Deterministic init mimicking nn.Linear shapes: W (out,in), b (out,)."""
    weights, biases = [], []
    for i in range(len(layers) - 1):
        fan_in, fan_out = layers[i], layers[i + 1]
        key, kw, kb = jax.random.split(key, 3)
        bound = 1.0 / (fan_in ** 0.5)
        w = jax.random.uniform(kw, (fan_out, fan_in), jnp.float32, -bound, bound)
        b = jax.random.uniform(kb, (fan_out,), jnp.float32, -bound, bound)
        weights.append(w)
        biases.append(b)
    return weights, biases


def reference_forward(x, weights, biases):
    """Pure-JAX reference of Exponential_Model.forward."""
    h = x
    n = len(weights)
    for i, (w, b) in enumerate(zip(weights, biases)):
        h = h @ w.T + b
        if i < n - 1:
            h = jnp.where(h > 0, h, LEAKY_SLOPE * h)
    return jnp.exp(h)


if __name__ == "__main__":
    # Exponential_Model(input_dim=16, hidden_layers=[32], output_dim=1)
    input_dim = 16
    hidden_layers = [32]
    output_dim = 1
    layers = [input_dim] + hidden_layers + [output_dim]

    key = jax.random.PRNGKey(0)
    key, kx = jax.random.split(key)

    # --- primary small test: single full-batch block ---
    batch = 8
    x = jax.random.normal(kx, (batch, input_dim), jnp.float32)
    weights, biases = init_params(key, layers)

    out = exponential_model_forward(x, weights, biases)
    out = jax.block_until_ready(out)
    ref = reference_forward(x, weights, biases)
    assert out.shape == (batch, output_dim)
    assert jnp.allclose(out, ref, rtol=1e-5, atol=1e-5), (out, ref)

    # --- secondary test: gridded, pipelined, ragged last block (no host pad) ---
    key, kx2 = jax.random.split(key)
    batch2 = 320
    x2 = jax.random.normal(kx2, (batch2, input_dim), jnp.float32)
    out2 = exponential_model_forward(x2, weights, biases, tile_b=128)  # grid=(3,), last block ragged
    out2 = jax.block_until_ready(out2)
    ref2 = reference_forward(x2, weights, biases)
    assert out2.shape == (batch2, output_dim)
    assert jnp.allclose(out2, ref2, rtol=1e-5, atol=1e-5)

    print("KERNEL_OK")
</pallas_src>

<mosaic_0001>
module attributes {stable_mosaic.version = 11 : i64} {
  func.func @kernel(%arg0: i32, %arg1: memref<16x8xf32, #tpu.memory_space<vmem>>, %arg2: memref<32x16xf32, #tpu.memory_space<vmem>>, %arg3: memref<32x1xf32, #tpu.memory_space<vmem>>, %arg4: memref<1x32xf32, #tpu.memory_space<vmem>>, %arg5: memref<1x1xf32, #tpu.memory_space<vmem>>, %arg6: memref<1x8xf32, #tpu.memory_space<vmem>>) attributes {dimension_semantics = [#tpu.dimension_semantics<parallel>], iteration_bounds = array<i64: 1>, scalar_prefetch = 0 : i64, scratch_operands = 0 : i64, tpu.core_type = #tpu.core_type<tc>, window_params = [{transform_indices = @transform_0, window_bounds = array<i64: 16, 8>}, {pipeline_mode = #tpu.pipeline_mode<synchronous>, transform_indices = @transform_1, window_bounds = array<i64: 32, 16>}, {pipeline_mode = #tpu.pipeline_mode<synchronous>, transform_indices = @transform_2, window_bounds = array<i64: 32, 1>}, {pipeline_mode = #tpu.pipeline_mode<synchronous>, transform_indices = @transform_3, window_bounds = array<i64: 1, 32>}, {pipeline_mode = #tpu.pipeline_mode<synchronous>, transform_indices = @transform_4, window_bounds = array<i64: 1, 1>}, {transform_indices = @transform_5, window_bounds = array<i64: 1, 8>}]} {
    %c0 = arith.constant 0 : index
    %c0_0 = arith.constant 0 : index
    %0 = vector.load %arg1[%c0, %c0_0] : memref<16x8xf32, #tpu.memory_space<vmem>>, vector<16x8xf32>
    %c0_1 = arith.constant 0 : index
    %c0_2 = arith.constant 0 : index
    %1 = vector.load %arg2[%c0_1, %c0_2] : memref<32x16xf32, #tpu.memory_space<vmem>>, vector<32x16xf32>
    %c0_3 = arith.constant 0 : index
    %c0_4 = arith.constant 0 : index
    %2 = vector.load %arg3[%c0_3, %c0_4] : memref<32x1xf32, #tpu.memory_space<vmem>>, vector<32x1xf32>
    %cst = arith.constant dense<0.000000e+00> : vector<32x8xf32>
    %3 = tpu.matmul %1, %0, %cst {dimension_numbers = #tpu.dot_dimension_numbers<[1], [0], [0], [1], [0, 0, 1, 1], [], []>} : vector<32x16xf32>, vector<16x8xf32>, vector<32x8xf32> -> vector<32x8xf32>
    %4 = vector.broadcast %2 : vector<32x1xf32> to vector<32x8xf32>
    %5 = arith.addf %3, %4 : vector<32x8xf32>
    %cst_5 = arith.constant 0.000000e+00 : f32
    %6 = vector.broadcast %cst_5 : f32 to vector<32x8xf32>
    %7 = arith.cmpf ogt, %5, %6 : vector<32x8xf32>
    %cst_6 = arith.constant 0.00999999977 : f32
    %8 = vector.broadcast %cst_6 : f32 to vector<32x8xf32>
    %9 = arith.mulf %8, %5 : vector<32x8xf32>
    %10 = arith.select %7, %5, %9 : vector<32x8xi1>, vector<32x8xf32>
    %c0_7 = arith.constant 0 : index
    %c0_8 = arith.constant 0 : index
    %11 = vector.load %arg4[%c0_7, %c0_8] : memref<1x32xf32, #tpu.memory_space<vmem>>, vector<1x32xf32>
    %c0_9 = arith.constant 0 : index
    %c0_10 = arith.constant 0 : index
    %12 = vector.load %arg5[%c0_9, %c0_10] : memref<1x1xf32, #tpu.memory_space<vmem>>, vector<1x1xf32>
    %cst_11 = arith.constant dense<0.000000e+00> : vector<1x8xf32>
    %13 = tpu.matmul %11, %10, %cst_11 {dimension_numbers = #tpu.dot_dimension_numbers<[1], [0], [0], [1], [0, 0, 1, 1], [], []>} : vector<1x32xf32>, vector<32x8xf32>, vector<1x8xf32> -> vector<1x8xf32>
    %14 = vector.broadcast %12 : vector<1x1xf32> to vector<1x8xf32>
    %15 = arith.addf %13, %14 : vector<1x8xf32>
    %16 = math.exp %15 : vector<1x8xf32>
    %c0_12 = arith.constant 0 : index
    %c0_13 = arith.constant 0 : index
    %17 = vector.load %arg6[%c0_12, %c0_13] : memref<1x8xf32, #tpu.memory_space<vmem>>, vector<1x8xf32>
    tpu.vector_store %arg6[%c0_12, %c0_13], %16 {strides = array<i32>} : memref<1x8xf32, #tpu.memory_space<vmem>>, vector<1x8xf32>,
    return
  }
  func.func @transform_0(%arg0: i32) -> (i32, i32) {
    %c0_i32 = arith.constant 0 : i32
    %c0_i32_0 = arith.constant 0 : i32
    return %c0_i32, %arg0 : i32, i32
  }
  func.func @transform_1(%arg0: i32) -> (i32, i32) {
    %c0_i32 = arith.constant 0 : i32
    %c0_i32_0 = arith.constant 0 : i32
    %c0_i32_1 = arith.constant 0 : i32
    return %c0_i32, %c0_i32_0 : i32, i32
  }
  func.func @transform_2(%arg0: i32) -> (i32, i32) {
    %c0_i32 = arith.constant 0 : i32
    %c0_i32_0 = arith.constant 0 : i32
    %c0_i32_1 = arith.constant 0 : i32
    return %c0_i32, %c0_i32_0 : i32, i32
  }
  func.func @transform_3(%arg0: i32) -> (i32, i32) {
    %c0_i32 = arith.constant 0 : i32
    %c0_i32_0 = arith.constant 0 : i32
    %c0_i32_1 = arith.constant 0 : i32
    return %c0_i32, %c0_i32_0 : i32, i32
  }
  func.func @transform_4(%arg0: i32) -> (i32, i32) {
    %c0_i32 = arith.constant 0 : i32
    %c0_i32_0 = arith.constant 0 : i32
    %c0_i32_1 = arith.constant 0 : i32
    return %c0_i32, %c0_i32_0 : i32, i32
  }
  func.func @transform_5(%arg0: i32) -> (i32, i32) {
    %c0_i32 = arith.constant 0 : i32
    %c0_i32_0 = arith.constant 0 : i32
    return %c0_i32, %arg0 : i32, i32
  }
}

</mosaic_0001>

<llo_original>
// kernel: tpu_custom_call.1
$region0: #{tpu_custom_call.1}
  #allocation0 [shape = 'u32[]', space=smem, size = 0x4, offset = 0x4, fixed_abs, tag = 'smem constant byte address 0x4 - core index']
  #allocation1 [shape = 'u32[144,128]{1,0:T(1,128)}', space=vmem, size = 0x12000, scoped, tag = 'internal scratch']
  #allocation2 [shape = 'f32[1,1]{1,0:T(1,128)S(1)}', space=vmem, size = 0x200, scoped, tag = 'scoped memory for tpu_custom_call.1']
  %s0 = inlined_call_operand.vmem [shape: f32[16,8], index: 0, kind: input, shape index: {}]
  %s1 = inlined_call_operand.vmem [shape: f32[32,16], index: 1, kind: input, shape index: {}]
  %s2 = inlined_call_operand.vmem [shape: f32[32,1], index: 2, kind: input, shape index: {}]
  %s3 = inlined_call_operand.vmem [shape: f32[1,32], index: 3, kind: input, shape index: {}]
  %s4 = inlined_call_operand.<no memory space> [shape: f32[1,1], index: 4, kind: input, shape index: {}]
  %s5 = inlined_call_operand.hbm [shape: f32[1,8], index: 5, kind: output, shape index: {}]
  %s6 = sld [smem:[#allocation0]]
  $region30: #{tpu_custom_call.1} parent=0
    _
  %s8 = ssub.s32 1, %s6
  %s9 = scalar_select 0, %s8, %s6
  %v10 = vstv %s4
  %11 = vst [vmem:[#allocation2] sm:$0x1] %v10
  $region1: #{tpu_custom_call.1} parent=0
    #allocation3 [shape = 'u8[512]{0}', space=vmem, size = 0x400, scoped, tag = 'output window, operand 0, single buffered']
    #allocation4 [shape = 's32[1]{0}', space=sflag, size = 0x4, scoped, tag = 'scoped memory for tpu_custom_call.1']
    %12 = vsyncpa [#allocation4], 0
    // Predicated region
    $region2: #{tpu_custom_call.1} parent=1 // pred_check
      _
    $region3: #{tpu_custom_call.1} parent=1 // pred_check_branch
      %14 = sbr.rel (0) target = $region5
    $region4: #{tpu_custom_call.1} parent=1 // pred_region
      _
    $region5: #{tpu_custom_call.1} parent=1 // pred_fallthru
      _
    // Predicated region
    $region6: #{tpu_custom_call.1} parent=1 // pred_check
      _
    $region7: #{tpu_custom_call.1} parent=1 // pred_check_branch
      %16 = sbr.rel (0) target = $region9
    $region8: #{tpu_custom_call.1} parent=1 // pred_region
      _
    $region9: #{tpu_custom_call.1} parent=1 // pred_fallthru
      _
    // Predicated region
    $region10: #{tpu_custom_call.1} parent=1 // pred_check
      _
    $region11: #{tpu_custom_call.1} parent=1 // pred_check_branch
      %18 = sbr.rel (0) target = $region13
    $region12: #{tpu_custom_call.1} parent=1 // pred_region
      _
    $region13: #{tpu_custom_call.1} parent=1 // pred_fallthru
      _
    // Predicated region
    $region14: #{tpu_custom_call.1} parent=1 // pred_check
      _
    $region15: #{tpu_custom_call.1} parent=1 // pred_check_branch
      %20 = sbr.rel (0) target = $region17
    $region16: #{tpu_custom_call.1} parent=1 // pred_region
      _
    $region17: #{tpu_custom_call.1} parent=1 // pred_fallthru
      _
    // Predicated region
    $region18: #{tpu_custom_call.1} parent=1 // pred_check
      _
    $region19: #{tpu_custom_call.1} parent=1 // pred_check_branch
      %22 = sbr.rel (0) target = $region21
    $region20: #{tpu_custom_call.1} parent=1 // pred_region
      _
    $region21: #{tpu_custom_call.1} parent=1 // pred_fallthru
      _
    %v23 = vld [vmem:[%s0] sm:$0xff]
    %v24 = vld [vmem:[%s0 + $0x8] sm:$0xff]
    %v25 = vld [vmem:[%s1] sm:$0xff]
    %v26 = vld [vmem:[%s1 + $0x8] sm:$0xff]
    %v27 = vld [vmem:[%s1 + $0x10] sm:$0xff]
    %v28 = vld [vmem:[%s1 + $0x18] sm:$0xff]
    %v29 = vld [vmem:[%s2] sm:$0xff]
    %v30 = vld [vmem:[%s2 + $0x8] sm:$0xff]
    %v31 = vld [vmem:[%s2 + $0x10] sm:$0xff]
    %v32 = vld [vmem:[%s2 + $0x18] sm:$0xff]
    %34 = vset.pattern.permute.xlu0 0
    %35 = vperm.xlu0 %34, %v29
    %v36 = vpop.permute.xlu0 %35
    %39 = vset.pattern.permute.xlu0 0
    %40 = vperm.xlu0 %39, %v30
    %v41 = vpop.permute.xlu0 %40
    %44 = vset.pattern.permute.xlu0 0
    %45 = vperm.xlu0 %44, %v31
    %v46 = vpop.permute.xlu0 %45
    %49 = vset.pattern.permute.xlu0 0
    %50 = vperm.xlu0 %49, %v32
    %v51 = vpop.permute.xlu0 %50
    %vm53 = vcmask 130048
    %v55 = vsel %vm53, %v25, 0
    %v58 = vsel %vm53, %v26, 0
    %v61 = vsel %vm53, %v27, 0
    %v64 = vsel %vm53, %v28, 0
    %66 = vmatprep.subr.mxu0 0.0
    %67 = vmatpush1.msra.mxu0 0.0
    %68 = vmatprep.subr.mxu0 0.0
    %69 = vmatpush1.msra.mxu0 0.0
    %70 = vmatprep.subr.mxu0 0.0
    %71 = vmatpush1.msra.mxu0 0.0
    %72 = vmatprep.subr.mxu0 0.0
    %73 = vmatpush1.msra.mxu0 0.0
    %74 = vmatprep.subr.mxu0 0.0
    %75 = vmatpush1.msra.mxu0 0.0
    %76 = vmatprep.subr.mxu0 0.0
    %77 = vmatpush1.msra.mxu0 0.0
    %78 = vmatprep.subr.mxu0 0.0
    %79 = vmatpush1.msra.mxu0 0.0
    %80 = vmatprep.subr.mxu0 0.0
    %81 = vmatpush1.msra.mxu0 0.0
    %82 = vmatprep.subr.mxu0 0.0
    %83 = vmatpush1.msra.mxu0 0.0
    %84 = vmatprep.subr.mxu0 0.0
    %85 = vmatpush1.msra.mxu0 0.0
    %86 = vmatprep.subr.mxu0 0.0
    %87 = vmatpush1.msra.mxu0 0.0
    %88 = vmatprep.subr.mxu0 0.0
    %89 = vmatpush1.msra.mxu0 0.0
    %90 = vmatprep.subr.mxu0 0.0
    %91 = vmatpush1.msra.mxu0 0.0
    %92 = vmatprep.subr.mxu0 0.0
    %93 = vmatpush1.msra.mxu0 0.0
    %94 = vmatprep.subr.mxu0 0.0
    %95 = vmatpush1.msra.mxu0 %v24
    %96 = vmatprep.subr.mxu0 0.0
    %97 = vmatpush1.msra.mxu0 %v23
    %98 = vmatprep.subr.mxu0 0.0
    %99 = vmatpush2.msra.mxu0 0.0
    %100 = vmatprep.subr.mxu0 0.0
    %101 = vmatpush2.msra.mxu0 0.0
    %102 = vmatprep.subr.mxu0 0.0
    %103 = vmatpush2.msra.mxu0 0.0
    %104 = vmatprep.subr.mxu0 0.0
    %105 = vmatpush2.msra.mxu0 0.0
    %106 = vmatprep.subr.mxu0 0.0
    %107 = vmatpush2.msra.mxu0 0.0
    %108 = vmatprep.subr.mxu0 0.0
    %109 = vmatpush2.msra.mxu0 0.0
    %110 = vmatprep.subr.mxu0 0.0
    %111 = vmatpush2.msra.mxu0 0.0
    %112 = vmatprep.subr.mxu0 0.0
    %113 = vmatpush2.msra.mxu0 0.0
    %114 = vmatprep.subr.mxu0 0.0
    %115 = vmatpush2.msra.mxu0 0.0
    %116 = vmatprep.subr.mxu0 0.0
    %117 = vmatpush2.msra.mxu0 0.0
    %118 = vmatprep.subr.mxu0 0.0
    %119 = vmatpush2.msra.mxu0 0.0
    %120 = vmatprep.subr.mxu0 0.0
    %121 = vmatpush2.msra.mxu0 0.0
    %122 = vmatprep.subr.mxu0 0.0
    %123 = vmatpush2.msra.mxu0 0.0
    %124 = vmatprep.subr.mxu0 0.0
    %125 = vmatpush2.msra.mxu0 0.0
    %126 = vmatprep.subr.mxu0 0.0
    %127 = vmatpush2.msra.mxu0 0.0
    %128 = vmatprep.subr.mxu0 0.0
    %129 = vmatpush2.msra.mxu0 0.0
    %130 = vmatprep.mubr.f32.mxu0 0.0
    %131 = vmatmul.mubr.f32.gmra.mxu0 %v55
    %v132 = vpop.f32.mrf.mxu0
    %v133 = vadd.f32 %v36, %v132
    %v134 = vpop.f32.mrf.mxu0
    %135 = vmatprep.mubr.f32.mxu0 0.0
    %136 = vmatmul.mubr.f32.gmra.mxu0 %v58
    %v137 = vpop.f32.mrf.mxu0
    %v138 = vadd.f32 %v41, %v137
    %v139 = vpop.f32.mrf.mxu0
    %140 = vmatprep.mubr.f32.mxu0 0.0
    %141 = vmatmul.mubr.f32.gmra.mxu0 %v61
    %v142 = vpop.f32.mrf.mxu0
    %v143 = vadd.f32 %v46, %v142
    %v144 = vpop.f32.mrf.mxu0
    %145 = vmatprep.mubr.f32.mxu0 0.0
    %146 = vmatmul.mubr.f32.gmra.mxu0 %v64
    %v147 = vpop.f32.mrf.mxu0
    %v148 = vadd.f32 %v51, %v147
    %v149 = vpop.f32.mrf.mxu0
    %150 = vdwg.mxu0
    %vm151 = vcmp.gt.f32.partialorder %v133, 0.0
    %vm152 = vcmp.gt.f32.partialorder %v138, 0.0
    %vm153 = vcmp.gt.f32.partialorder %v143, 0.0
    %vm154 = vcmp.gt.f32.partialorder %v148, 0.0
    %v155 = vmul.f32 %v133, 0.01
    %v156 = vmul.f32 %v138, 0.01
    %v157 = vmul.f32 %v143, 0.01
    %v158 = vmul.f32 %v148, 0.01
    %v159 = vsel %vm151, %v133, %v155
    %v160 = vsel %vm152, %v138, %v156
    %v161 = vsel %vm153, %v143, %v157
    %v162 = vsel %vm154, %v148, %v158
    %v163 = vld [vmem:[%s3] sm:$0x1]
    %v164 = vld [vmem:[#allocation2] sm:$0x1]
    %166 = vset.pattern.permute.xlu0 0
    %167 = vperm.xlu0 %166, %v164
    %v168 = vpop.permute.xlu0 %167
    %v170 = vlaneseq
    %v171 = vshrl.u32 %v170, 7
    %v172 = vsub.s32 0, %v171
    %v173 = vrot.slane %v168, %v172
    %vm174 = vcmask 261120
    %v176 = vsel %vm174, %v163, 0
    %178 = vmatprep.subr.mxu0 0.0
    %179 = vmatpush1.msra.mxu0 0.0
    %180 = vmatprep.subr.mxu0 0.0
    %181 = vmatpush1.msra.mxu0 0.0
    %182 = vmatprep.subr.mxu0 0.0
    %183 = vmatpush1.msra.mxu0 0.0
    %184 = vmatprep.subr.mxu0 0.0
    %185 = vmatpush1.msra.mxu0 0.0
    %186 = vmatprep.subr.mxu0 0.0
    %187 = vmatpush1.msra.mxu0 0.0
    %188 = vmatprep.subr.mxu0 0.0
    %189 = vmatpush1.msra.mxu0 0.0
    %190 = vmatprep.subr.mxu0 0.0
    %191 = vmatpush1.msra.mxu0 0.0
    %192 = vmatprep.subr.mxu0 0.0
    %193 = vmatpush1.msra.mxu0 0.0
    %194 = vmatprep.subr.mxu0 0.0
    %195 = vmatpush1.msra.mxu0 0.0
    %196 = vmatprep.subr.mxu0 0.0
    %197 = vmatpush1.msra.mxu0 0.0
    %198 = vmatprep.subr.mxu0 0.0
    %199 = vmatpush1.msra.mxu0 0.0
    %200 = vmatprep.subr.mxu0 0.0
    %201 = vmatpush1.msra.mxu0 0.0
    %202 = vmatprep.subr.mxu0 0.0
    %203 = vmatpush1.msra.mxu0 %v162
    %204 = vmatprep.subr.mxu0 0.0
    %205 = vmatpush1.msra.mxu0 %v161
    %206 = vmatprep.subr.mxu0 0.0
    %207 = vmatpush1.msra.mxu0 %v160
    %208 = vmatprep.subr.mxu0 0.0
    %209 = vmatpush1.msra.mxu0 %v159
    %210 = vmatprep.subr.mxu0 0.0
    %211 = vmatpush2.msra.mxu0 0.0
    %212 = vmatprep.subr.mxu0 0.0
    %213 = vmatpush2.msra.mxu0 0.0
    %214 = vmatprep.subr.mxu0 0.0
    %215 = vmatpush2.msra.mxu0 0.0
    %216 = vmatprep.subr.mxu0 0.0
    %217 = vmatpush2.msra.mxu0 0.0
    %218 = vmatprep.subr.mxu0 0.0
    %219 = vmatpush2.msra.mxu0 0.0
    %220 = vmatprep.subr.mxu0 0.0
    %221 = vmatpush2.msra.mxu0 0.0
    %222 = vmatprep.subr.mxu0 0.0
    %223 = vmatpush2.msra.mxu0 0.0
    %224 = vmatprep.subr.mxu0 0.0
    %225 = vmatpush2.msra.mxu0 0.0
    %226 = vmatprep.subr.mxu0 0.0
    %227 = vmatpush2.msra.mxu0 0.0
    %228 = vmatprep.subr.mxu0 0.0
    %229 = vmatpush2.msra.mxu0 0.0
    %230 = vmatprep.subr.mxu0 0.0
    %231 = vmatpush2.msra.mxu0 0.0
    %232 = vmatprep.subr.mxu0 0.0
    %233 = vmatpush2.msra.mxu0 0.0
    %234 = vmatprep.subr.mxu0 0.0
    %235 = vmatpush2.msra.mxu0 0.0
    %236 = vmatprep.subr.mxu0 0.0
    %237 = vmatpush2.msra.mxu0 0.0
    %238 = vmatprep.subr.mxu0 0.0
    %239 = vmatpush2.msra.mxu0 0.0
    %240 = vmatprep.subr.mxu0 0.0
    %241 = vmatpush2.msra.mxu0 0.0
    %242 = vmatprep.mubr.f32.mxu0 0.0
    %243 = vmatmul.mubr.f32.gmra.mxu0 %v176
    %v244 = vpop.f32.mrf.mxu0
    %v245 = vadd.f32 %v173, %v244
    %v246 = vpop.f32.mrf.mxu0
    %247 = vdwg.mxu0
    %v248 = vmul.f32 %v245, 1.442695
    %v249 = vpow.pop %v248
    %vm250 = vcmask 57344
    %251 = vst.msk [vmem:[#allocation3] sm:$0x1] %vm250, %v249
    // Predicated region
    $region22: #{tpu_custom_call.1} parent=1 // pred_check
      _
    $region23: #{tpu_custom_call.1} parent=1 // pred_check_branch
      %253 = sbr.rel (0) target = $region25
    $region24: #{tpu_custom_call.1} parent=1 // pred_region
      %s255 = ssub.s32 16, 16
      %256 = vsyncadd [#allocation4], %s255
      %s258 = sshll.u32 [#allocation3], 4
      %s259 = int_to_ptr.vmem [resolvable:$true] %s258
      %261 = dma.vmem_to_hbm [thread:$0]  %s259, 16, %s5, [#allocation4]
    $region25: #{tpu_custom_call.1} parent=1 // pred_fallthru
      _
    // Predicated region
    $region26: #{tpu_custom_call.1} parent=1 // pred_check
      _
    $region27: #{tpu_custom_call.1} parent=1 // pred_check_branch
      %263 = sbr.rel (0) target = $region29
    $region28: #{tpu_custom_call.1} parent=1 // pred_region
      %264 = dma.done [#allocation4], 16
    $region29: #{tpu_custom_call.1} parent=1 // pred_fallthru
      _
    %265 = vsyncpa [#allocation4], 1

</llo_original>
